<compile_context>
chip_gen: v6e
topology: v6e:2x2x1
jax: 0.10.0
libtpu: 0.0.40
codegen_flags: <defaults>
</compile_context>

<pallas_src>
import functools

import jax
import jax.numpy as jnp
from jax.experimental import pallas as pl
from jax.experimental.pallas import tpu as pltpu


def _compose_kernel(th_ref, tw_ref, obj_ref, hm_ref, mk_ref,
                    w3_ref, b3_ref, w1_ref, b1_ref, out_ref, *, compute_dtype):
    # th/tw/obj: (C, L) lane-dense slabs (L = bb * T*H*W); hm/mk: (1, L).
    th = th_ref[...]
    tw = tw_ref[...]

    # Outer product: pure aligned VPU multiply (no reshape, no relayout).
    outer = (th * tw).astype(compute_dtype)                       # (C, L)
    obj_in = obj_ref[...].astype(compute_dtype)                   # (C, L)
    w3 = w3_ref[...].astype(compute_dtype)                        # (O, C)
    w1 = w1_ref[...].astype(compute_dtype)                        # (O, C)

    # 1x1x1 Conv3d and 1x1 Conv1d == channel matmuls on the MXU (f32 acc).
    y = jnp.dot(w3, outer, preferred_element_type=jnp.float32) + b3_ref[...]
    obj = jnp.dot(w1, obj_in, preferred_element_type=jnp.float32) + b1_ref[...]

    hm = hm_ref[...]                                               # (1, L)
    mk = mk_ref[...]                                               # (1, L)

    # y*(1-hm) + obj*hm  ==  y + (obj - y)*hm   (one fewer VPU multiply).
    out = y + (obj - y) * hm
    out_ref[...] = (out * mk).astype(out_ref.dtype)


def dynamic_compose_block(fea_th, fea_tw, fea_obj, heatmap, mask,
                          w3, b3, w1, b1, *,
                          compute_dtype=jnp.float32,
                          batches_per_step=None):
    B, C, T, H = fea_th.shape
    W = fea_tw.shape[-1]
    O = w3.shape[0]
    N = T * H * W
    BN = B * N

    # Batches per grid step: target >= 1024 output lanes/step to amortize the
    # per-step overhead (v5e/v6e), but keep >= 2 grid steps when B allows so
    # the "parallel" axis maps across both v7x TensorCores.
    if batches_per_step is None:
        bb = max(1, min(B, (1024 + N - 1) // N))
        if B > 1 and B // bb < 2:
            bb = max(1, B // 2)
    else:
        bb = max(1, min(B, batches_per_step))
    while B % bb != 0:
        bb -= 1
    G = B // bb
    L = bb * N  # lanes per step (must be a multiple of 128 unless bb == B)

    # ---- Wrapper-side lane-dense pre-expansion (layout plumbing, HBM-level,
    # ~32 KB/operand/batch of extra traffic — negligible). ----
    # outer[b,c,t,h,w] = th[b,c,t,h] * tw[b,c,t,w], flat index n = (t*H+h)*W+w
    th_rep = jnp.repeat(fea_th.reshape(B, C, T * H), W, axis=-1)            # (B,C,N)
    tw_til = jnp.tile(fea_tw.reshape(B, C, T, 1, W),
                      (1, 1, 1, H, 1)).reshape(B, C, N)                     # (B,C,N)
    obj_til = jnp.repeat(fea_obj, H * W, axis=-1)                           # (B,C,N)

    # (C, B*N) slabs -> each grid step is one wide (O,C)@(C, bb*N) matmul.
    th_slab = th_rep.transpose(1, 0, 2).reshape(C, BN)
    tw_slab = tw_til.transpose(1, 0, 2).reshape(C, BN)
    obj_slab = obj_til.transpose(1, 0, 2).reshape(C, BN)
    hm_slab = heatmap.reshape(B, 1, N).transpose(1, 0, 2).reshape(1, BN)
    mk_slab = mask.reshape(B, 1, N).transpose(1, 0, 2).reshape(1, BN)
    b3_col = b3.reshape(O, 1)
    b1_col = b1.reshape(O, 1)

    kernel = functools.partial(_compose_kernel, compute_dtype=compute_dtype)

    out_slab = pl.pallas_call(
        kernel,
        out_shape=jax.ShapeDtypeStruct((O, BN), fea_th.dtype),
        grid_spec=pltpu.PrefetchScalarGridSpec(
            num_scalar_prefetch=0,
            grid=(G,),
            in_specs=[
                pl.BlockSpec((C, L), lambda g: (0, g)),   # th slab
                pl.BlockSpec((C, L), lambda g: (0, g)),   # tw slab
                pl.BlockSpec((C, L), lambda g: (0, g)),   # obj slab
                pl.BlockSpec((1, L), lambda g: (0, g)),   # heatmap
                pl.BlockSpec((1, L), lambda g: (0, g)),   # mask
                pl.BlockSpec((O, C), lambda g: (0, 0)),   # w3 (Conv3d 1x1x1)
                pl.BlockSpec((O, 1), lambda g: (0, 0)),   # b3
                pl.BlockSpec((O, C), lambda g: (0, 0)),   # w1 (Conv1d 1x1)
                pl.BlockSpec((O, 1), lambda g: (0, 0)),   # b1
            ],
            out_specs=pl.BlockSpec((O, L), lambda g: (0, g)),
        ),
        compiler_params=pltpu.CompilerParams(
            dimension_semantics=("parallel",)),
    )(th_slab, tw_slab, obj_slab, hm_slab, mk_slab, w3, b3_col, w1, b1_col)

    # Layout plumbing back to NCDHW.
    return out_slab.reshape(O, B, N).transpose(1, 0, 2).reshape(B, O, T, H, W)


def reference(fea_th, fea_tw, fea_obj, heatmap, mask, w3, b3, w1, b1):
    out = fea_th[..., None] * fea_tw[..., None, :]                     # (B,C,T,H,W)
    out = jnp.einsum('oc,bcthw->bothw', w3, out) \
        + b3[None, :, None, None, None]                                # Conv3d 1x1x1
    obj = jnp.einsum('oc,bct->bot', w1, fea_obj) + b1[None, :, None]   # Conv1d 1x1
    obj = obj[..., None, None]
    out = out * (1.0 - heatmap) + obj * heatmap
    out = out * mask
    return out


if __name__ == "__main__":
    B, C, O, T, H, W = 2, 32, 32, 4, 8, 8
    key = jax.random.PRNGKey(0)
    ks = jax.random.split(key, 9)

    fea_th = jax.random.normal(ks[0], (B, C, T, H), jnp.float32)
    fea_tw = jax.random.normal(ks[1], (B, C, T, W), jnp.float32)
    fea_obj = jax.random.normal(ks[2], (B, C, T), jnp.float32)
    heatmap = jax.nn.sigmoid(
        jax.random.normal(ks[3], (B, 1, T, H, W), jnp.float32))
    mask = (jax.random.uniform(ks[4], (B, 1, T, H, W)) > 0.3).astype(jnp.float32)

    # Conv3d weight (O,C,1,1,1) and Conv1d weight (O,C,1) with kernel size 1
    # collapse to (O, C) matrices.
    w3 = jax.random.normal(ks[5], (O, C), jnp.float32) / jnp.sqrt(C)
    b3 = 0.01 * jax.random.normal(ks[6], (O,), jnp.float32)
    w1 = jax.random.normal(ks[7], (O, C), jnp.float32) / jnp.sqrt(C)
    b1 = 0.01 * jax.random.normal(ks[8], (O,), jnp.float32)

    ref = reference(fea_th, fea_tw, fea_obj, heatmap, mask, w3, b3, w1, b1)

    # f32 end-to-end (portable, v5e-safe).
    out = dynamic_compose_block(fea_th, fea_tw, fea_obj, heatmap, mask,
                                w3, b3, w1, b1)
    out = jax.block_until_ready(out)
    assert out.shape == (B, O, T, H, W)
    assert jnp.allclose(out, ref, rtol=2e-2, atol=2e-2), "f32 mismatch vs reference"

    # bf16 matmul inputs / f32 accumulation (v6e/v7x fast path; blend stays f32).
    out_bf16 = dynamic_compose_block(fea_th, fea_tw, fea_obj, heatmap, mask,
                                     w3, b3, w1, b1,
                                     compute_dtype=jnp.bfloat16)
    out_bf16 = jax.block_until_ready(out_bf16)
    assert jnp.allclose(out_bf16, ref, rtol=6e-2, atol=6e-2), "bf16 mismatch vs reference"

    print("KERNEL_OK")
</pallas_src>

<mosaic_0001>
module attributes {stable_mosaic.version = 11 : i64} {
  func.func @_compose_kernel(%arg0: i32, %arg1: memref<32x256xf32, #tpu.memory_space<vmem>>, %arg2: memref<32x256xf32, #tpu.memory_space<vmem>>, %arg3: memref<32x256xf32, #tpu.memory_space<vmem>>, %arg4: memref<1x256xf32, #tpu.memory_space<vmem>>, %arg5: memref<1x256xf32, #tpu.memory_space<vmem>>, %arg6: memref<32x32xf32, #tpu.memory_space<vmem>>, %arg7: memref<32x1xf32, #tpu.memory_space<vmem>>, %arg8: memref<32x32xf32, #tpu.memory_space<vmem>>, %arg9: memref<32x1xf32, #tpu.memory_space<vmem>>, %arg10: memref<32x256xf32, #tpu.memory_space<vmem>>) attributes {dimension_semantics = [#tpu.dimension_semantics<parallel>], iteration_bounds = array<i64: 2>, scalar_prefetch = 0 : i64, scratch_operands = 0 : i64, tpu.core_type = #tpu.core_type<tc>, window_params = [{transform_indices = @transform_0, window_bounds = array<i64: 32, 256>}, {transform_indices = @transform_1, window_bounds = array<i64: 32, 256>}, {transform_indices = @transform_2, window_bounds = array<i64: 32, 256>}, {transform_indices = @transform_3, window_bounds = array<i64: 1, 256>}, {transform_indices = @transform_4, window_bounds = array<i64: 1, 256>}, {pipeline_mode = #tpu.pipeline_mode<synchronous>, transform_indices = @transform_5, window_bounds = array<i64: 32, 32>}, {pipeline_mode = #tpu.pipeline_mode<synchronous>, transform_indices = @transform_6, window_bounds = array<i64: 32, 1>}, {pipeline_mode = #tpu.pipeline_mode<synchronous>, transform_indices = @transform_7, window_bounds = array<i64: 32, 32>}, {pipeline_mode = #tpu.pipeline_mode<synchronous>, transform_indices = @transform_8, window_bounds = array<i64: 32, 1>}, {transform_indices = @transform_9, window_bounds = array<i64: 32, 256>}]} {
    %c0 = arith.constant 0 : index
    %c0_0 = arith.constant 0 : index
    %0 = vector.load %arg1[%c0, %c0_0] : memref<32x256xf32, #tpu.memory_space<vmem>>, vector<32x256xf32>
    %c0_1 = arith.constant 0 : index
    %c0_2 = arith.constant 0 : index
    %1 = vector.load %arg2[%c0_1, %c0_2] : memref<32x256xf32, #tpu.memory_space<vmem>>, vector<32x256xf32>
    %2 = arith.mulf %0, %1 : vector<32x256xf32>
    %c0_3 = arith.constant 0 : index
    %c0_4 = arith.constant 0 : index
    %3 = vector.load %arg3[%c0_3, %c0_4] : memref<32x256xf32, #tpu.memory_space<vmem>>, vector<32x256xf32>
    %c0_5 = arith.constant 0 : index
    %c0_6 = arith.constant 0 : index
    %4 = vector.load %arg6[%c0_5, %c0_6] : memref<32x32xf32, #tpu.memory_space<vmem>>, vector<32x32xf32>
    %c0_7 = arith.constant 0 : index
    %c0_8 = arith.constant 0 : index
    %5 = vector.load %arg8[%c0_7, %c0_8] : memref<32x32xf32, #tpu.memory_space<vmem>>, vector<32x32xf32>
    %cst = arith.constant dense<0.000000e+00> : vector<32x256xf32>
    %6 = tpu.matmul %4, %2, %cst {dimension_numbers = #tpu.dot_dimension_numbers<[1], [0], [0], [1], [0, 0, 1, 1], [], []>} : vector<32x32xf32>, vector<32x256xf32>, vector<32x256xf32> -> vector<32x256xf32>
    %c0_9 = arith.constant 0 : index
    %c0_10 = arith.constant 0 : index
    %7 = vector.load %arg7[%c0_9, %c0_10] : memref<32x1xf32, #tpu.memory_space<vmem>>, vector<32x1xf32>
    %8 = vector.broadcast %7 : vector<32x1xf32> to vector<32x256xf32>
    %9 = arith.addf %6, %8 : vector<32x256xf32>
    %cst_11 = arith.constant dense<0.000000e+00> : vector<32x256xf32>
    %10 = tpu.matmul %5, %3, %cst_11 {dimension_numbers = #tpu.dot_dimension_numbers<[1], [0], [0], [1], [0, 0, 1, 1], [], []>} : vector<32x32xf32>, vector<32x256xf32>, vector<32x256xf32> -> vector<32x256xf32>
    %c0_12 = arith.constant 0 : index
    %c0_13 = arith.constant 0 : index
    %11 = vector.load %arg9[%c0_12, %c0_13] : memref<32x1xf32, #tpu.memory_space<vmem>>, vector<32x1xf32>
    %12 = vector.broadcast %11 : vector<32x1xf32> to vector<32x256xf32>
    %13 = arith.addf %10, %12 : vector<32x256xf32>
    %c0_14 = arith.constant 0 : index
    %c0_15 = arith.constant 0 : index
    %14 = vector.load %arg4[%c0_14, %c0_15] : memref<1x256xf32, #tpu.memory_space<vmem>>, vector<1x256xf32>
    %c0_16 = arith.constant 0 : index
    %c0_17 = arith.constant 0 : index
    %15 = vector.load %arg5[%c0_16, %c0_17] : memref<1x256xf32, #tpu.memory_space<vmem>>, vector<1x256xf32>
    %16 = arith.subf %13, %9 : vector<32x256xf32>
    %17 = vector.broadcast %14 : vector<1x256xf32> to vector<32x256xf32>
    %18 = arith.mulf %16, %17 : vector<32x256xf32>
    %19 = arith.addf %9, %18 : vector<32x256xf32>
    %20 = vector.broadcast %15 : vector<1x256xf32> to vector<32x256xf32>
    %21 = arith.mulf %19, %20 : vector<32x256xf32>
    %c0_18 = arith.constant 0 : index
    %c0_19 = arith.constant 0 : index
    %22 = vector.load %arg10[%c0_18, %c0_19] : memref<32x256xf32, #tpu.memory_space<vmem>>, vector<32x256xf32>
    tpu.vector_store %arg10[%c0_18, %c0_19], %21 {strides = array<i32>} : memref<32x256xf32, #tpu.memory_space<vmem>>, vector<32x256xf32>,
    return
  }
  func.func @transform_0(%arg0: i32) -> (i32, i32) {
    %c0_i32 = arith.constant 0 : i32
    %c0_i32_0 = arith.constant 0 : i32
    return %c0_i32, %arg0 : i32, i32
  }
  func.func @transform_1(%arg0: i32) -> (i32, i32) {
    %c0_i32 = arith.constant 0 : i32
    %c0_i32_0 = arith.constant 0 : i32
    return %c0_i32, %arg0 : i32, i32
  }
  func.func @transform_2(%arg0: i32) -> (i32, i32) {
    %c0_i32 = arith.constant 0 : i32
    %c0_i32_0 = arith.constant 0 : i32
    return %c0_i32, %arg0 : i32, i32
  }
  func.func @transform_3(%arg0: i32) -> (i32, i32) {
    %c0_i32 = arith.constant 0 : i32
    %c0_i32_0 = arith.constant 0 : i32
    return %c0_i32, %arg0 : i32, i32
  }
  func.func @transform_4(%arg0: i32) -> (i32, i32) {
    %c0_i32 = arith.constant 0 : i32
    %c0_i32_0 = arith.constant 0 : i32
    return %c0_i32, %arg0 : i32, i32
  }
  func.func @transform_5(%arg0: i32) -> (i32, i32) {
    %c0_i32 = arith.constant 0 : i32
    %c0_i32_0 = arith.constant 0 : i32
    %c0_i32_1 = arith.constant 0 : i32
    return %c0_i32, %c0_i32_0 : i32, i32
  }
  func.func @transform_6(%arg0: i32) -> (i32, i32) {
    %c0_i32 = arith.constant 0 : i32
    %c0_i32_0 = arith.constant 0 : i32
    %c0_i32_1 = arith.constant 0 : i32
    return %c0_i32, %c0_i32_0 : i32, i32
  }
  func.func @transform_7(%arg0: i32) -> (i32, i32) {
    %c0_i32 = arith.constant 0 : i32
    %c0_i32_0 = arith.constant 0 : i32
    %c0_i32_1 = arith.constant 0 : i32
    return %c0_i32, %c0_i32_0 : i32, i32
  }
  func.func @transform_8(%arg0: i32) -> (i32, i32) {
    %c0_i32 = arith.constant 0 : i32
    %c0_i32_0 = arith.constant 0 : i32
    %c0_i32_1 = arith.constant 0 : i32
    return %c0_i32, %c0_i32_0 : i32, i32
  }
  func.func @transform_9(%arg0: i32) -> (i32, i32) {
    %c0_i32 = arith.constant 0 : i32
    %c0_i32_0 = arith.constant 0 : i32
    return %c0_i32, %arg0 : i32, i32
  }
}

</mosaic_0001>

<llo_original>
// kernel: tpu_custom_call.1
$region0: #{tpu_custom_call.1}
  #allocation0 [shape = 'u32[]', space=smem, size = 0x4, offset = 0x4, fixed_abs, tag = 'smem constant byte address 0x4 - core index']
  #allocation1 [shape = 'u32[144,128]{1,0:T(1,128)}', space=vmem, size = 0x12000, scoped, tag = 'internal scratch']
  %s0 = inlined_call_operand.hbm [shape: f32[32,512], index: 0, kind: input, shape index: {}]
  %s1 = inlined_call_operand.hbm [shape: f32[32,512], index: 1, kind: input, shape index: {}]
  %s2 = inlined_call_operand.hbm [shape: f32[32,512], index: 2, kind: input, shape index: {}]
  %s3 = inlined_call_operand.vmem [shape: f32[1,512], index: 3, kind: input, shape index: {}]
  %s4 = inlined_call_operand.vmem [shape: f32[1,512], index: 4, kind: input, shape index: {}]
  %s5 = inlined_call_operand.vmem [shape: f32[32,32], index: 5, kind: input, shape index: {}]
  %s6 = inlined_call_operand.vmem [shape: f32[32,1], index: 6, kind: input, shape index: {}]
  %s7 = inlined_call_operand.vmem [shape: f32[32,32], index: 7, kind: input, shape index: {}]
  %s8 = inlined_call_operand.vmem [shape: f32[32,1], index: 8, kind: input, shape index: {}]
  %s9 = inlined_call_operand.hbm [shape: f32[32,512], index: 9, kind: output, shape index: {}]
  %s10 = sld [smem:[#allocation0]]
  $region81: #{tpu_custom_call.1} parent=0
    _
  %s12 = ssub.s32 1, %s10
  %s13 = scalar_select 0, %s12, %s10
  $region1: #{tpu_custom_call.1} parent=0
    #allocation2 [shape = 'u8[65536]{0}', space=vmem, size = 0x10000, scoped, tag = 'input window, operand 0']
    #allocation3 [shape = 's32[2]{0}', space=sflag, size = 0x8, scoped, tag = 'scoped memory for tpu_custom_call.1']
    #allocation4 [shape = 's32[2]{0}', space=sflag, size = 0x8, scoped, tag = 'scoped memory for tpu_custom_call.1']
    #allocation5 [shape = 'u8[65536]{0}', space=vmem, size = 0x10000, scoped, tag = 'input window, operand 1']
    #allocation6 [shape = 's32[2]{0}', space=sflag, size = 0x8, scoped, tag = 'scoped memory for tpu_custom_call.1']
    #allocation7 [shape = 'u8[65536]{0}', space=vmem, size = 0x10000, scoped, tag = 'input window, operand 2']
    #allocation8 [shape = 'u8[65536]{0}', space=vmem, size = 0x10000, scoped, tag = 'output window, operand 0']
    %14 = vsyncpa [#allocation3], 0
    %s15 = scalar_lea.sflag [#allocation3], 1
    %16 = vsyncpa %s15, 0
    %17 = vsyncpa [#allocation6], 0
    %s18 = scalar_lea.sflag [#allocation6], 1
    %19 = vsyncpa %s18, 0
    %20 = vsyncpa [#allocation4], 0
    %s21 = scalar_lea.sflag [#allocation4], 1
    %22 = vsyncpa %s21, 0
    loop: start=0, step=1, limit=4
    $region2: #{tpu_custom_call.1} parent=1 // loop_pre_header
      _
    $region3: #{tpu_custom_call.1} parent=1 // loop_header
      %s24 = sphi 0, %s28
      %p25 = scmp.ge.s32.totalorder %s24, 4
      %s34 = sphi 0, %s36
      %s37 = sphi 0, %s34
      %s38 = sphi 0, %s37
      %s54 = sphi 0, %s38
      %s60 = sphi 0, %s62
      %s63 = sphi 0, %s60
      %s64 = sphi 0, %s63
      %s80 = sphi 0, %s64
      %s86 = sphi 0, %s88
      %s89 = sphi 0, %s86
      %s90 = sphi 0, %s89
      %s106 = sphi 0, %s90
      %s112 = sphi 0, %s114
      %s115 = sphi 0, %s112
      %s116 = sphi 0, %s115
      %s132 = sphi 0, %s116
      %s138 = sphi 0, %s140
      %s141 = sphi 0, %s138
      %s142 = sphi 0, %s141
      %s158 = sphi 0, %s142
      %s162 = sphi 0, %s162
      %s164 = sphi 0, %s162
      %s165 = sphi 0, %s164
      %s179 = sphi 0, %s165
      %s183 = sphi 0, %s183
      %s185 = sphi 0, %s183
      %s186 = sphi 0, %s185
      %s200 = sphi 0, %s186
      %s204 = sphi 0, %s204
      %s206 = sphi 0, %s204
      %s207 = sphi 0, %s206
      %s221 = sphi 0, %s207
      %s225 = sphi 0, %s225
      %s227 = sphi 0, %s225
      %s228 = sphi 0, %s227
      %s242 = sphi 0, %s228
      %s248 = sphi 0, %s250
      %s251 = sphi 0, %s248
      %s252 = sphi 0, %s251
      %s268 = sphi 0, %s252
    $region4: #{tpu_custom_call.1} parent=1 // loop_header_branch
      %27 = sbr.rel (%p25) target = $region8
    $region5: #{tpu_custom_call.1} parent=1 // loop_body
      %s29 = ssub.s32 %s24, 1
      %s30 = ssub.s32 %s24, 2
      %s31 = sadd.s32 %s24, 1
      %s32 = ssub.s32 %s24, %s31
      %p33 = scmp.eq.s32.totalorder %s32, 0
      %s35 = sadd.s32 %s34, 1
      %s36 = scalar_select %p33, %s34, %s35
      %p39 = pneg %p33
      %p40 = scmp.eq.s32.totalorder %s24, 1
      %p41 = por %p39, %p40
      %p42 = scmp.ne.s32.totalorder %s34, %s37
      %p43 = scmp.eq.s32.totalorder %s24, 0
      %p44 = por %p42, %p43
      %p45 = scmp.ne.s32.totalorder %s34, %s37
      %p46 = scmp.eq.s32.totalorder %s29, 1
      %p47 = por %p45, %p46
      %p48 = scmp.ne.s32.totalorder %s37, %s38
      %p49 = scmp.eq.s32.totalorder %s29, 0
      %p50 = por %p48, %p49
      %p51 = scmp.ne.s32.totalorder %s37, %s38
      %p52 = scmp.eq.s32.totalorder %s30, 1
      %p53 = por %p51, %p52
      %p55 = scmp.ne.s32.totalorder %s38, %s54
      %p56 = scmp.eq.s32.totalorder %s30, 0
      %p57 = por %p55, %p56
      %s58 = ssub.s32 %s24, %s31
      %p59 = scmp.eq.s32.totalorder %s58, 0
      %s61 = sadd.s32 %s60, 1
      %s62 = scalar_select %p59, %s60, %s61
      %p65 = pneg %p59
      %p66 = scmp.eq.s32.totalorder %s24, 1
      %p67 = por %p65, %p66
      %p68 = scmp.ne.s32.totalorder %s60, %s63
      %p69 = scmp.eq.s32.totalorder %s24, 0
      %p70 = por %p68, %p69
      %p71 = scmp.ne.s32.totalorder %s60, %s63
      %p72 = scmp.eq.s32.totalorder %s29, 1
      %p73 = por %p71, %p72
      %p74 = scmp.ne.s32.totalorder %s63, %s64
      %p75 = scmp.eq.s32.totalorder %s29, 0
      %p76 = por %p74, %p75
      %p77 = scmp.ne.s32.totalorder %s63, %s64
      %p78 = scmp.eq.s32.totalorder %s30, 1
      %p79 = por %p77, %p78
      %p81 = scmp.ne.s32.totalorder %s64, %s80
      %p82 = scmp.eq.s32.totalorder %s30, 0
      %p83 = por %p81, %p82
      %s84 = ssub.s32 %s24, %s31
      %p85 = scmp.eq.s32.totalorder %s84, 0
      %s87 = sadd.s32 %s86, 1
      %s88 = scalar_select %p85, %s86, %s87
      %p91 = pneg %p85
      %p92 = scmp.eq.s32.totalorder %s24, 1
      %p93 = por %p91, %p92
      %p94 = scmp.ne.s32.totalorder %s86, %s89
      %p95 = scmp.eq.s32.totalorder %s24, 0
      %p96 = por %p94, %p95
      %p97 = scmp.ne.s32.totalorder %s86, %s89
      %p98 = scmp.eq.s32.totalorder %s29, 1
      %p99 = por %p97, %p98
      %p100 = scmp.ne.s32.totalorder %s89, %s90
      %p101 = scmp.eq.s32.totalorder %s29, 0
      %p102 = por %p100, %p101
      %p103 = scmp.ne.s32.totalorder %s89, %s90
      %p104 = scmp.eq.s32.totalorder %s30, 1
      %p105 = por %p103, %p104
      %p107 = scmp.ne.s32.totalorder %s90, %s106
      %p108 = scmp.eq.s32.totalorder %s30, 0
      %p109 = por %p107, %p108
      %s110 = ssub.s32 %s24, %s31
      %p111 = scmp.eq.s32.totalorder %s110, 0
      %s113 = sadd.s32 %s112, 1
      %s114 = scalar_select %p111, %s112, %s113
      %p117 = pneg %p111
      %p118 = scmp.eq.s32.totalorder %s24, 1
      %p119 = por %p117, %p118
      %p120 = scmp.ne.s32.totalorder %s112, %s115
      %p121 = scmp.eq.s32.totalorder %s24, 0
      %p122 = por %p120, %p121
      %p123 = scmp.ne.s32.totalorder %s112, %s115
      %p124 = scmp.eq.s32.totalorder %s29, 1
      %p125 = por %p123, %p124
      %p126 = scmp.ne.s32.totalorder %s115, %s116
      %p127 = scmp.eq.s32.totalorder %s29, 0
      %p128 = por %p126, %p127
      %p129 = scmp.ne.s32.totalorder %s115, %s116
      %p130 = scmp.eq.s32.totalorder %s30, 1
      %p131 = por %p129, %p130
      %p133 = scmp.ne.s32.totalorder %s116, %s132
      %p134 = scmp.eq.s32.totalorder %s30, 0
      %p135 = por %p133, %p134
      %s136 = ssub.s32 %s24, %s31
      %p137 = scmp.eq.s32.totalorder %s136, 0
      %s139 = sadd.s32 %s138, 1
      %s140 = scalar_select %p137, %s138, %s139
      %p143 = pneg %p137
      %p144 = scmp.eq.s32.totalorder %s24, 1
      %p145 = por %p143, %p144
      %p146 = scmp.ne.s32.totalorder %s138, %s141
      %p147 = scmp.eq.s32.totalorder %s24, 0
      %p148 = por %p146, %p147
      %p149 = scmp.ne.s32.totalorder %s138, %s141
      %p150 = scmp.eq.s32.totalorder %s29, 1
      %p151 = por %p149, %p150
      %p152 = scmp.ne.s32.totalorder %s141, %s142
      %p153 = scmp.eq.s32.totalorder %s29, 0
      %p154 = por %p152, %p153
      %p155 = scmp.ne.s32.totalorder %s141, %s142
      %p156 = scmp.eq.s32.totalorder %s30, 1
      %p157 = por %p155, %p156
      %p159 = scmp.ne.s32.totalorder %s142, %s158
      %p160 = scmp.eq.s32.totalorder %s30, 0
      %p161 = por %p159, %p160
      %s163 = sadd.s32 %s162, 1
      %p166 = scmp.eq.s32.totalorder %s24, 1
      %p167 = scmp.ne.s32.totalorder %s162, %s164
      %p168 = scmp.eq.s32.totalorder %s24, 0
      %p169 = por %p167, %p168
      %p170 = scmp.ne.s32.totalorder %s162, %s164
      %p171 = scmp.eq.s32.totalorder %s29, 1
      %p172 = por %p170, %p171
      %p173 = scmp.ne.s32.totalorder %s164, %s165
      %p174 = scmp.eq.s32.totalorder %s29, 0
      %p175 = por %p173, %p174
      %p176 = scmp.ne.s32.totalorder %s164, %s165
      %p177 = scmp.eq.s32.totalorder %s30, 1
      %p178 = por %p176, %p177
      %p180 = scmp.ne.s32.totalorder %s165, %s179
      %p181 = scmp.eq.s32.totalorder %s30, 0
      %p182 = por %p180, %p181
      %s184 = sadd.s32 %s183, 1
      %p187 = scmp.eq.s32.totalorder %s24, 1
      %p188 = scmp.ne.s32.totalorder %s183, %s185
      %p189 = scmp.eq.s32.totalorder %s24, 0
      %p190 = por %p188, %p189
      %p191 = scmp.ne.s32.totalorder %s183, %s185
      %p192 = scmp.eq.s32.totalorder %s29, 1
      %p193 = por %p191, %p192
      %p194 = scmp.ne.s32.totalorder %s185, %s186
      %p195 = scmp.eq.s32.totalorder %s29, 0
      %p196 = por %p194, %p195
      %p197 = scmp.ne.s32.totalorder %s185, %s186
      %p198 = scmp.eq.s32.totalorder %s30, 1
      %p199 = por %p197, %p198
      %p201 = scmp.ne.s32.totalorder %s186, %s200
      %p202 = scmp.eq.s32.totalorder %s30, 0
      %p203 = por %p201, %p202
      %s205 = sadd.s32 %s204, 1
      %p208 = scmp.eq.s32.totalorder %s24, 1
      %p209 = scmp.ne.s32.totalorder %s204, %s206
      %p210 = scmp.eq.s32.totalorder %s24, 0
      %p211 = por %p209, %p210
      %p212 = scmp.ne.s32.totalorder %s204, %s206
      %p213 = scmp.eq.s32.totalorder %s29, 1
      %p214 = por %p212, %p213
      %p215 = scmp.ne.s32.totalorder %s206, %s207
      %p216 = scmp.eq.s32.totalorder %s29, 0
      %p217 = por %p215, %p216
      %p218 = scmp.ne.s32.totalorder %s206, %s207
      %p219 = scmp.eq.s32.totalorder %s30, 1
      %p220 = por %p218, %p219
      %p222 = scmp.ne.s32.totalorder %s207, %s221
      %p223 = scmp.eq.s32.totalorder %s30, 0
      %p224 = por %p222, %p223
      %s226 = sadd.s32 %s225, 1
      %p229 = scmp.eq.s32.totalorder %s24, 1
      %p230 = scmp.ne.s32.totalorder %s225, %s227
      %p231 = scmp.eq.s32.totalorder %s24, 0
      %p232 = por %p230, %p231
      %p233 = scmp.ne.s32.totalorder %s225, %s227
      %p234 = scmp.eq.s32.totalorder %s29, 1
      %p235 = por %p233, %p234
      %p236 = scmp.ne.s32.totalorder %s227, %s228
      %p237 = scmp.eq.s32.totalorder %s29, 0
      %p238 = por %p236, %p237
      %p239 = scmp.ne.s32.totalorder %s227, %s228
      %p240 = scmp.eq.s32.totalorder %s30, 1
      %p241 = por %p239, %p240
      %p243 = scmp.ne.s32.totalorder %s228, %s242
      %p244 = scmp.eq.s32.totalorder %s30, 0
      %p245 = por %p243, %p244
      %s246 = ssub.s32 %s24, %s31
      %p247 = scmp.eq.s32.totalorder %s246, 0
      %s249 = sadd.s32 %s248, 1
      %s250 = scalar_select %p247, %s248, %s249
      %p253 = pneg %p247
      %p254 = scmp.eq.s32.totalorder %s24, 1
      %p255 = por %p253, %p254
      %p256 = scmp.ne.s32.totalorder %s248, %s251
      %p257 = scmp.eq.s32.totalorder %s24, 0
      %p258 = por %p256, %p257
      %p259 = scmp.ne.s32.totalorder %s248, %s251
      %p260 = scmp.eq.s32.totalorder %s29, 1
      %p261 = por %p259, %p260
      %p262 = scmp.ne.s32.totalorder %s251, %s252
      %p263 = scmp.eq.s32.totalorder %s29, 0
      %p264 = por %p262, %p263
      %p265 = scmp.ne.s32.totalorder %s251, %s252
      %p266 = scmp.eq.s32.totalorder %s30, 1
      %p267 = por %p265, %p266
      %p269 = scmp.ne.s32.totalorder %s252, %s268
      %p270 = scmp.eq.s32.totalorder %s30, 0
      %p271 = por %p269, %p270
      %p272 = scmp.le.s32.totalorder 1, %s24
      %p273 = scmp.lt.s32.totalorder %s24, 3
      %p274 = pnand %p272, %p273
      %p275 = pneg %p274
      // Predicated region
      $region9: #{tpu_custom_call.1} parent=5 // pred_check
        _
      $region10: #{tpu_custom_call.1} parent=5 // pred_check_branch
        %277 = sbr.rel (%p274) target = $region12
      $region11: #{tpu_custom_call.1} parent=5 // pred_region
        %s278 = ssub.s32 %s24, 1
        // Predicated region
        $region13: #{tpu_custom_call.1} parent=11 // pred_check
          %p279 = pneg %p175
        $region14: #{tpu_custom_call.1} parent=11 // pred_check_branch
          %281 = sbr.rel (%p279) target = $region16
        $region15: #{tpu_custom_call.1} parent=11 // pred_region
          _
        $region16: #{tpu_custom_call.1} parent=11 // pred_fallthru
          _
        // Predicated region
        $region17: #{tpu_custom_call.1} parent=11 // pred_check
          %p282 = pneg %p196
        $region18: #{tpu_custom_call.1} parent=11 // pred_check_branch
          %284 = sbr.rel (%p282) target = $region20
        $region19: #{tpu_custom_call.1} parent=11 // pred_region
          _
        $region20: #{tpu_custom_call.1} parent=11 // pred_fallthru
          _
        // Predicated region
        $region21: #{tpu_custom_call.1} parent=11 // pred_check
          %p285 = pneg %p217
        $region22: #{tpu_custom_call.1} parent=11 // pred_check_branch
          %287 = sbr.rel (%p285) target = $region24
        $region23: #{tpu_custom_call.1} parent=11 // pred_region
          _
        $region24: #{tpu_custom_call.1} parent=11 // pred_fallthru
          _
        // Predicated region
        $region25: #{tpu_custom_call.1} parent=11 // pred_check
          %p288 = pneg %p238
        $region26: #{tpu_custom_call.1} parent=11 // pred_check_branch
          %290 = sbr.rel (%p288) target = $region28
        $region27: #{tpu_custom_call.1} parent=11 // pred_region
          _
        $region28: #{tpu_custom_call.1} parent=11 // pred_fallthru
          _
      $region12: #{tpu_custom_call.1} parent=5 // pred_fallthru
        _
      %p291 = scmp.lt.s32.totalorder %s24, 2
      // Predicated region
      $region29: #{tpu_custom_call.1} parent=5 // pred_check
        %p292 = pneg %p291
      $region30: #{tpu_custom_call.1} parent=5 // pred_check_branch
        %294 = sbr.rel (%p292) target = $region32
      $region31: #{tpu_custom_call.1} parent=5 // pred_region
        // Predicated region
        $region33: #{tpu_custom_call.1} parent=31 // pred_check
          %p295 = pneg %p44
        $region34: #{tpu_custom_call.1} parent=31 // pred_check_branch
          %297 = sbr.rel (%p295) target = $region36
        $region35: #{tpu_custom_call.1} parent=31 // pred_region
          %s298 = sand.u32 %s34, 1
          %s299 = scalar_lea.sflag [#allocation3], %s298
          %s300 = sand.u32 %s34, 1
          %s301 = smul.addr %s300, 64
          %s302 = scalar_lea.vmem [#allocation2], %s301
          %s303 = smul.u32 2, %s24
          %s305 = ssub.s32 1024, 1024
          %306 = vsyncadd %s299, %s305
          %s307 = smul.addr %s303, 128
          %s308 = scalar_lea.hbm %s0, %s307
          %s309 = sshll.u32 %s302, 4
          %s310 = int_to_ptr.vmem [resolvable:$true] %s309
          %315 = dma.hbm_to_vmem [thread:$0]  %s308, 1024, %s310, %s299, 512, 256, 16
        $region36: #{tpu_custom_call.1} parent=31 // pred_fallthru
          _
        // Predicated region
        $region37: #{tpu_custom_call.1} parent=31 // pred_check
          %p316 = pneg %p70
        $region38: #{tpu_custom_call.1} parent=31 // pred_check_branch
          %318 = sbr.rel (%p316) target = $region40
        $region39: #{tpu_custom_call.1} parent=31 // pred_region
          %s319 = sand.u32 %s24, 1
          %s320 = scalar_lea.sflag [#allocation6], %s319
          %s321 = sand.u32 %s60, 1
          %s322 = smul.addr %s321, 64
          %s323 = scalar_lea.vmem [#allocation5], %s322
          %s324 = smul.u32 2, %s24
          %s326 = ssub.s32 1024, 1024
          %327 = vsyncadd %s320, %s326
          %s328 = smul.addr %s324, 128
          %s329 = scalar_lea.hbm %s1, %s328
          %s330 = sshll.u32 %s323, 4
          %s331 = int_to_ptr.vmem [resolvable:$true] %s330
          %336 = dma.hbm_to_vmem [thread:$0]  %s329, 1024, %s331, %s320, 512, 256, 16
        $region40: #{tpu_custom_call.1} parent=31 // pred_fallthru
          _
        // Predicated region
        $region41: #{tpu_custom_call.1} parent=31 // pred_check
          %p337 = pneg %p96
        $region42: #{tpu_custom_call.1} parent=31 // pred_check_branch
          %339 = sbr.rel (%p337) target = $region44
        $region43: #{tpu_custom_call.1} parent=31 // pred_region
          %s340 = sand.u32 %s24, 1
          %s341 = scalar_lea.sflag [#allocation6], %s340
          %s342 = sand.u32 %s86, 1
          %s343 = smul.addr %s342, 64
          %s344 = scalar_lea.vmem [#allocation7], %s343
          %s345 = smul.u32 2, %s24
          %s347 = ssub.s32 1024, 1024
          %348 = vsyncadd %s341, %s347
          %s349 = smul.addr %s345, 128
          %s350 = scalar_lea.hbm %s2, %s349
          %s351 = sshll.u32 %s344, 4
          %s352 = int_to_ptr.vmem [resolvable:$true] %s351
          %357 = dma.hbm_to_vmem [thread:$0]  %s350, 1024, %s352, %s341, 512, 256, 16
        $region44: #{tpu_custom_call.1} parent=31 // pred_fallthru
          _
        // Predicated region
        $region45: #{tpu_custom_call.1} parent=31 // pred_check
          %p358 = pneg %p122
        $region46: #{tpu_custom_call.1} parent=31 // pred_check_branch
          %360 = sbr.rel (%p358) target = $region48
        $region47: #{tpu_custom_call.1} parent=31 // pred_region
          %s361 = smul.u32 2, %s24
          %p362 = scmp.lt.s32.totalorder %s361, 3
          %s363 = scalar_select %p362, %s361, 3
          %s364 = scalar_lea.vmem %s3, %s363
          %s365 = smul.u32 2, %s24
        $region48: #{tpu_custom_call.1} parent=31 // pred_fallthru
          _
        // Predicated region
        $region49: #{tpu_custom_call.1} parent=31 // pred_check
          %p366 = pneg %p148
        $region50: #{tpu_custom_call.1} parent=31 // pred_check_branch
          %368 = sbr.rel (%p366) target = $region52
        $region51: #{tpu_custom_call.1} parent=31 // pred_region
          %s369 = smul.u32 2, %s24
          %p370 = scmp.lt.s32.totalorder %s369, 3
          %s371 = scalar_select %p370, %s369, 3
          %s372 = scalar_lea.vmem %s4, %s371
          %s373 = smul.u32 2, %s24
        $region52: #{tpu_custom_call.1} parent=31 // pred_fallthru
          _
      $region32: #{tpu_custom_call.1} parent=5 // pred_fallthru
        _
      %p374 = scmp.le.s32.totalorder 1, %s24
      %p375 = scmp.lt.s32.totalorder %s24, 3
      %p376 = pnand %p374, %p375
      %p377 = pneg %p376
      // Predicated region
      $region53: #{tpu_custom_call.1} parent=5 // pred_check
        _
      $region54: #{tpu_custom_call.1} parent=5 // pred_check_branch
        %379 = sbr.rel (%p376) target = $region56
      $region55: #{tpu_custom_call.1} parent=5 // pred_region
        %s380 = ssub.s32 %s24, 1
        %s381 = sand.u32 %s37, 1
        %s382 = scalar_lea.sflag [#allocation3], %s381
        %s383 = sand.u32 %s37, 1
        %s384 = smul.addr %s383, 64
        %s385 = scalar_lea.vmem [#allocation2], %s384
        // Predicated region
        $region57: #{tpu_custom_call.1} parent=55 // pred_check
          %p386 = pneg %p50
        $region58: #{tpu_custom_call.1} parent=55 // pred_check_branch
          %388 = sbr.rel (%p386) target = $region60
        $region59: #{tpu_custom_call.1} parent=55 // pred_region
          %389 = dma.done %s382, 1024
        $region60: #{tpu_custom_call.1} parent=55 // pred_fallthru
          _
        %s390 = sand.u32 %s29, 1
        %s391 = scalar_lea.sflag [#allocation6], %s390
        %s392 = sand.u32 %s63, 1
        %s393 = smul.addr %s392, 64
        %s394 = scalar_lea.vmem [#allocation5], %s393
        // Predicated region
        $region61: #{tpu_custom_call.1} parent=55 // pred_check
          %p395 = pneg %p76
        $region62: #{tpu_custom_call.1} parent=55 // pred_check_branch
          %397 = sbr.rel (%p395) target = $region64
        $region63: #{tpu_custom_call.1} parent=55 // pred_region
          %398 = dma.done %s391, 1024
        $region64: #{tpu_custom_call.1} parent=55 // pred_fallthru
          _
        %s399 = sand.u32 %s29, 1
        %s400 = scalar_lea.sflag [#allocation6], %s399
        %s401 = sand.u32 %s89, 1
        %s402 = smul.addr %s401, 64
        %s403 = scalar_lea.vmem [#allocation7], %s402
        // Predicated region
        $region65: #{tpu_custom_call.1} parent=55 // pred_check
          %p404 = pneg %p102
        $region66: #{tpu_custom_call.1} parent=55 // pred_check_branch
          %406 = sbr.rel (%p404) target = $region68
        $region67: #{tpu_custom_call.1} parent=55 // pred_region
          %407 = dma.done %s400, 1024
        $region68: #{tpu_custom_call.1} parent=55 // pred_fallthru
          _
        %s408 = sand.u32 %s37, 1
        %s409 = scalar_lea.sflag [#allocation3], %s408
        %s410 = sand.u32 %s37, 1
        %s411 = smul.addr %s410, 64
        %s412 = scalar_lea.vmem [#allocation2], %s411
        %p413 = pneg %p50
        %p414 = pneg %p47
        %s415 = sand.u32 %s29, 1
        %s416 = scalar_lea.sflag [#allocation6], %s415
        %s417 = sand.u32 %s63, 1
        %s418 = smul.addr %s417, 64
        %s419 = scalar_lea.vmem [#allocation5], %s418
        %p420 = pneg %p76
        %p421 = pneg %p73
        %s422 = sand.u32 %s29, 1
        %s423 = scalar_lea.sflag [#allocation6], %s422
        %s424 = sand.u32 %s89, 1
        %s425 = smul.addr %s424, 64
        %s426 = scalar_lea.vmem [#allocation7], %s425
        %p427 = pneg %p102
        %p428 = pneg %p99
        %s429 = smul.u32 2, %s29
        %p430 = scmp.lt.s32.totalorder %s429, 3
        %s431 = scalar_select %p430, %s429, 3
        %s432 = scalar_lea.vmem %s3, %s431
        %p433 = pneg %p128
        %p434 = pneg %p125
        %s435 = smul.u32 2, %s29
        %p436 = scmp.lt.s32.totalorder %s435, 3
        %s437 = scalar_select %p436, %s435, 3
        %s438 = scalar_lea.vmem %s4, %s437
        %p439 = pneg %p154
        %p440 = pneg %p151
        %p441 = pneg %p175
        %p442 = pneg %p172
        %p443 = pneg %p196
        %p444 = pneg %p193
        %p445 = pneg %p217
        %p446 = pneg %p214
        %p447 = pneg %p238
        %p448 = pneg %p235
        %p449 = pneg %p264
        %p450 = pneg %p261
        %s451 = sand.u32 %s251, 1
        %s452 = scalar_lea.sflag [#allocation4], %s451
        %s453 = sand.u32 %s251, 1
        %s454 = smul.addr %s453, 64
        %s455 = scalar_lea.vmem [#allocation8], %s454
        %s456 = smul.u32 2, %s29
        %s457 = smul.u32 2, %s29
        %s458 = smul.u32 2, %s29
        %s459 = smul.u32 2, %s29
        %p460 = scmp.lt.s32.totalorder %s459, 3
        %s461 = scalar_select %p460, %s459, 3
        %s462 = scalar_lea.vmem %s3, %s461
        %s463 = smul.u32 2, %s29
        %s464 = smul.u32 2, %s29
        %p465 = scmp.lt.s32.totalorder %s464, 3
        %s466 = scalar_select %p465, %s464, 3
        %s467 = scalar_lea.vmem %s4, %s466
        %s468 = smul.u32 2, %s29
        %s469 = smul.u32 2, %s29
        %v470 = vld [vmem:[%s385] sm:$0xff]
        %v471 = vld [vmem:[%s385 + $0x8] sm:$0xff]
        %v472 = vld [vmem:[%s385 + $0x10] sm:$0xff]
        %v473 = vld [vmem:[%s385 + $0x18] sm:$0xff]
        %v474 = vld [vmem:[%s385 + $0x20] sm:$0xff]
        %v475 = vld [vmem:[%s385 + $0x28] sm:$0xff]
        %v476 = vld [vmem:[%s385 + $0x30] sm:$0xff]
        %v477 = vld [vmem:[%s385 + $0x38] sm:$0xff]
        %v478 = vld [vmem:[%s394] sm:$0xff]
        %v479 = vld [vmem:[%s394 + $0x8] sm:$0xff]
        %v480 = vld [vmem:[%s394 + $0x10] sm:$0xff]
        %v481 = vld [vmem:[%s394 + $0x18] sm:$0xff]
        %v482 = vld [vmem:[%s394 + $0x20] sm:$0xff]
        %v483 = vld [vmem:[%s394 + $0x28] sm:$0xff]
        %v484 = vld [vmem:[%s394 + $0x30] sm:$0xff]
        %v485 = vld [vmem:[%s394 + $0x38] sm:$0xff]
        %v486 = vmul.f32 %v470, %v478
        %v487 = vmul.f32 %v471, %v479
        %v488 = vmul.f32 %v472, %v480
        %v489 = vmul.f32 %v473, %v481
        %v490 = vmul.f32 %v474, %v482
        %v491 = vmul.f32 %v475, %v483
        %v492 = vmul.f32 %v476, %v484
        %v493 = vmul.f32 %v477, %v485
        %v494 = vld [vmem:[%s403] sm:$0xff]
        %v495 = vld [vmem:[%s403 + $0x8] sm:$0xff]
        %v496 = vld [vmem:[%s403 + $0x10] sm:$0xff]
        %v497 = vld [vmem:[%s403 + $0x18] sm:$0xff]
        %v498 = vld [vmem:[%s403 + $0x20] sm:$0xff]
        %v499 = vld [vmem:[%s403 + $0x28] sm:$0xff]
        %v500 = vld [vmem:[%s403 + $0x30] sm:$0xff]
        %v501 = vld [vmem:[%s403 + $0x38] sm:$0xff]
        %v502 = vld [vmem:[%s5] sm:$0xff]
        %v503 = vld [vmem:[%s5 + $0x8] sm:$0xff]
        %v504 = vld [vmem:[%s5 + $0x10] sm:$0xff]
        %v505 = vld [vmem:[%s5 + $0x18] sm:$0xff]
        %v506 = vld [vmem:[%s7] sm:$0xff]
        %v507 = vld [vmem:[%s7 + $0x8] sm:$0xff]
        %v508 = vld [vmem:[%s7 + $0x10] sm:$0xff]
        %v509 = vld [vmem:[%s7 + $0x18] sm:$0xff]
        %v510 = vld [vmem:[%s6] sm:$0xff]
        %v511 = vld [vmem:[%s6 + $0x8] sm:$0xff]
        %v512 = vld [vmem:[%s6 + $0x10] sm:$0xff]
        %v513 = vld [vmem:[%s6 + $0x18] sm:$0xff]
        %515 = vset.pattern.permute.xlu0 0
        %516 = vperm.xlu0 %515, %v510
        %v517 = vpop.permute.xlu0 %516
        %520 = vset.pattern.permute.xlu0 0
        %521 = vperm.xlu0 %520, %v511
        %v522 = vpop.permute.xlu0 %521
        %525 = vset.pattern.permute.xlu0 0
        %526 = vperm.xlu0 %525, %v512
        %v527 = vpop.permute.xlu0 %526
        %530 = vset.pattern.permute.xlu0 0
        %531 = vperm.xlu0 %530, %v513
        %v532 = vpop.permute.xlu0 %531
        %vm534 = vcmask 261120
        %v536 = vsel %vm534, %v502, 0
        %v539 = vsel %vm534, %v503, 0
        %v542 = vsel %vm534, %v504, 0
        %v545 = vsel %vm534, %v505, 0
        %547 = vmatprep.subr.mxu0 0.0
        %548 = vmatpush1.msra.mxu0 0.0
        %549 = vmatprep.subr.mxu0 0.0
        %550 = vmatpush1.msra.mxu0 0.0
        %551 = vmatprep.subr.mxu0 0.0
        %552 = vmatpush1.msra.mxu0 0.0
        %553 = vmatprep.subr.mxu0 0.0
        %554 = vmatpush1.msra.mxu0 0.0
        %555 = vmatprep.subr.mxu0 0.0
        %556 = vmatpush1.msra.mxu0 0.0
        %557 = vmatprep.subr.mxu0 0.0
        %558 = vmatpush1.msra.mxu0 0.0
        %559 = vmatprep.subr.mxu0 0.0
        %560 = vmatpush1.msra.mxu0 0.0
        %561 = vmatprep.subr.mxu0 0.0
        %562 = vmatpush1.msra.mxu0 0.0
        %563 = vmatprep.subr.mxu0 0.0
        %564 = vmatpush1.msra.mxu0 0.0
        %565 = vmatprep.subr.mxu0 0.0
        %566 = vmatpush1.msra.mxu0 0.0
        %567 = vmatprep.subr.mxu0 0.0
        %568 = vmatpush1.msra.mxu0 0.0
        %569 = vmatprep.subr.mxu0 0.0
        %570 = vmatpush1.msra.mxu0 0.0
        %571 = vmatprep.subr.mxu0 %v493
        %572 = vmatpush1.msra.mxu0 %v492
        %573 = vmatprep.subr.mxu0 %v491
        %574 = vmatpush1.msra.mxu0 %v490
        %575 = vmatprep.subr.mxu0 %v489
        %576 = vmatpush1.msra.mxu0 %v488
        %577 = vmatprep.subr.mxu0 %v487
        %578 = vmatpush1.msra.mxu0 %v486
        %579 = vmatprep.subr.mxu0 0.0
        %580 = vmatpush2.msra.mxu0 0.0
        %581 = vmatprep.subr.mxu0 0.0
        %582 = vmatpush2.msra.mxu0 0.0
        %583 = vmatprep.subr.mxu0 0.0
        %584 = vmatpush2.msra.mxu0 0.0
        %585 = vmatprep.subr.mxu0 0.0
        %586 = vmatpush2.msra.mxu0 0.0
        %587 = vmatprep.subr.mxu0 0.0
        %588 = vmatpush2.msra.mxu0 0.0
        %589 = vmatprep.subr.mxu0 0.0
        %590 = vmatpush2.msra.mxu0 0.0
        %591 = vmatprep.subr.mxu0 0.0
        %592 = vmatpush2.msra.mxu0 0.0
        %593 = vmatprep.subr.mxu0 0.0
        %594 = vmatpush2.msra.mxu0 0.0
        %595 = vmatprep.subr.mxu0 0.0
        %596 = vmatpush2.msra.mxu0 0.0
        %597 = vmatprep.subr.mxu0 0.0
        %598 = vmatpush2.msra.mxu0 0.0
        %599 = vmatprep.subr.mxu0 0.0
        %600 = vmatpush2.msra.mxu0 0.0
        %601 = vmatprep.subr.mxu0 0.0
        %602 = vmatpush2.msra.mxu0 0.0
        %603 = vmatprep.subr.mxu0 0.0
        %604 = vmatpush2.msra.mxu0 0.0
        %605 = vmatprep.subr.mxu0 0.0
        %606 = vmatpush2.msra.mxu0 0.0
        %607 = vmatprep.subr.mxu0 0.0
        %608 = vmatpush2.msra.mxu0 0.0
        %609 = vmatprep.subr.mxu0 0.0
        %610 = vmatpush2.msra.mxu0 0.0
        %611 = vmatprep.mubr.f32.mxu0 0.0
        %612 = vmatmul.mubr.f32.gmra.mxu0 %v536
        %v613 = vpop.f32.mrf.mxu0
        %v614 = vadd.f32 %v517, %v613
        %v615 = vpop.f32.mrf.mxu0
        %v616 = vadd.f32 %v517, %v615
        %617 = vmatprep.mubr.f32.mxu0 0.0
        %618 = vmatmul.mubr.f32.gmra.mxu0 %v539
        %v619 = vpop.f32.mrf.mxu0
        %v620 = vadd.f32 %v522, %v619
        %v621 = vpop.f32.mrf.mxu0
        %v622 = vadd.f32 %v522, %v621
        %623 = vmatprep.mubr.f32.mxu0 0.0
        %624 = vmatmul.mubr.f32.gmra.mxu0 %v542
        %v625 = vpop.f32.mrf.mxu0
        %v626 = vadd.f32 %v527, %v625
        %v627 = vpop.f32.mrf.mxu0
        %v628 = vadd.f32 %v527, %v627
        %629 = vmatprep.mubr.f32.mxu0 0.0
        %630 = vmatmul.mubr.f32.gmra.mxu0 %v545
        %v631 = vpop.f32.mrf.mxu0
        %v632 = vadd.f32 %v532, %v631
        %v633 = vpop.f32.mrf.mxu0
        %v634 = vadd.f32 %v532, %v633
        %635 = vdwg.mxu0
        %v636 = vld [vmem:[%s8] sm:$0xff]
        %v637 = vld [vmem:[%s8 + $0x8] sm:$0xff]
        %v638 = vld [vmem:[%s8 + $0x10] sm:$0xff]
        %v639 = vld [vmem:[%s8 + $0x18] sm:$0xff]
        %641 = vset.pattern.permute.xlu0 0
        %642 = vperm.xlu0 %641, %v636
        %v643 = vpop.permute.xlu0 %642
        %646 = vset.pattern.permute.xlu0 0
        %647 = vperm.xlu0 %646, %v637
        %v648 = vpop.permute.xlu0 %647
        %651 = vset.pattern.permute.xlu0 0
        %652 = vperm.xlu0 %651, %v638
        %v653 = vpop.permute.xlu0 %652
        %656 = vset.pattern.permute.xlu0 0
        %657 = vperm.xlu0 %656, %v639
        %v658 = vpop.permute.xlu0 %657
        %v661 = vsel %vm534, %v506, 0
        %v664 = vsel %vm534, %v507, 0
        %v667 = vsel %vm534, %v508, 0
        %v670 = vsel %vm534, %v509, 0
        %672 = vmatprep.subr.mxu0 0.0
        %673 = vmatpush1.msra.mxu0 0.0
        %674 = vmatprep.subr.mxu0 0.0
        %675 = vmatpush1.msra.mxu0 0.0
        %676 = vmatprep.subr.mxu0 0.0
        %677 = vmatpush1.msra.mxu0 0.0
        %678 = vmatprep.subr.mxu0 0.0
        %679 = vmatpush1.msra.mxu0 0.0
        %680 = vmatprep.subr.mxu0 0.0
        %681 = vmatpush1.msra.mxu0 0.0
        %682 = vmatprep.subr.mxu0 0.0
        %683 = vmatpush1.msra.mxu0 0.0
        %684 = vmatprep.subr.mxu0 0.0
        %685 = vmatpush1.msra.mxu0 0.0
        %686 = vmatprep.subr.mxu0 0.0
        %687 = vmatpush1.msra.mxu0 0.0
        %688 = vmatprep.subr.mxu0 0.0
        %689 = vmatpush1.msra.mxu0 0.0
        %690 = vmatprep.subr.mxu0 0.0
        %691 = vmatpush1.msra.mxu0 0.0
        %692 = vmatprep.subr.mxu0 0.0
        %693 = vmatpush1.msra.mxu0 0.0
        %694 = vmatprep.subr.mxu0 0.0
        %695 = vmatpush1.msra.mxu0 0.0
        %696 = vmatprep.subr.mxu0 %v501
        %697 = vmatpush1.msra.mxu0 %v500
        %698 = vmatprep.subr.mxu0 %v499
        %699 = vmatpush1.msra.mxu0 %v498
        %700 = vmatprep.subr.mxu0 %v497
        %701 = vmatpush1.msra.mxu0 %v496
        %702 = vmatprep.subr.mxu0 %v495
        %703 = vmatpush1.msra.mxu0 %v494
        %704 = vmatprep.subr.mxu0 0.0
        %705 = vmatpush2.msra.mxu0 0.0
        %706 = vmatprep.subr.mxu0 0.0
        %707 = vmatpush2.msra.mxu0 0.0
        %708 = vmatprep.subr.mxu0 0.0
        %709 = vmatpush2.msra.mxu0 0.0
        %710 = vmatprep.subr.mxu0 0.0
        %711 = vmatpush2.msra.mxu0 0.0
        %712 = vmatprep.subr.mxu0 0.0
        %713 = vmatpush2.msra.mxu0 0.0
        %714 = vmatprep.subr.mxu0 0.0
        %715 = vmatpush2.msra.mxu0 0.0
        %716 = vmatprep.subr.mxu0 0.0
        %717 = vmatpush2.msra.mxu0 0.0
        %718 = vmatprep.subr.mxu0 0.0
        %719 = vmatpush2.msra.mxu0 0.0
        %720 = vmatprep.subr.mxu0 0.0
        %721 = vmatpush2.msra.mxu0 0.0
        %722 = vmatprep.subr.mxu0 0.0
        %723 = vmatpush2.msra.mxu0 0.0
        %724 = vmatprep.subr.mxu0 0.0
        %725 = vmatpush2.msra.mxu0 0.0
        %726 = vmatprep.subr.mxu0 0.0
        %727 = vmatpush2.msra.mxu0 0.0
        %728 = vmatprep.subr.mxu0 0.0
        %729 = vmatpush2.msra.mxu0 0.0
        %730 = vmatprep.subr.mxu0 0.0
        %731 = vmatpush2.msra.mxu0 0.0
        %732 = vmatprep.subr.mxu0 0.0
        %733 = vmatpush2.msra.mxu0 0.0
        %734 = vmatprep.subr.mxu0 0.0
        %735 = vmatpush2.msra.mxu0 0.0
        %736 = vmatprep.mubr.f32.mxu0 0.0
        %737 = vmatmul.mubr.f32.gmra.mxu0 %v661
        %v738 = vpop.f32.mrf.mxu0
        %v739 = vadd.f32 %v643, %v738
        %v740 = vpop.f32.mrf.mxu0
        %v741 = vadd.f32 %v643, %v740
        %742 = vmatprep.mubr.f32.mxu0 0.0
        %743 = vmatmul.mubr.f32.gmra.mxu0 %v664
        %v744 = vpop.f32.mrf.mxu0
        %v745 = vadd.f32 %v648, %v744
        %v746 = vpop.f32.mrf.mxu0
        %v747 = vadd.f32 %v648, %v746
        %748 = vmatprep.mubr.f32.mxu0 0.0
        %749 = vmatmul.mubr.f32.gmra.mxu0 %v667
        %v750 = vpop.f32.mrf.mxu0
        %v751 = vadd.f32 %v653, %v750
        %v752 = vpop.f32.mrf.mxu0
        %v753 = vadd.f32 %v653, %v752
        %754 = vmatprep.mubr.f32.mxu0 0.0
        %755 = vmatmul.mubr.f32.gmra.mxu0 %v670
        %v756 = vpop.f32.mrf.mxu0
        %v757 = vadd.f32 %v658, %v756
        %v758 = vpop.f32.mrf.mxu0
        %v759 = vadd.f32 %v658, %v758
        %760 = vdwg.mxu0
        %v761 = vld [vmem:[%s462] sm:$0x3]
        %v762 = vld [vmem:[%s467] sm:$0x3]
        %v763 = vsub.f32 %v739, %v614
        %v764 = vsub.f32 %v741, %v616
        %v765 = vsub.f32 %v745, %v620
        %v766 = vsub.f32 %v747, %v622
        %v767 = vsub.f32 %v751, %v626
        %v768 = vsub.f32 %v753, %v628
        %v769 = vsub.f32 %v757, %v632
        %v770 = vsub.f32 %v759, %v634
        %v772 = vlaneseq
        %v773 = vshrl.u32 %v772, 7
        %v774 = vsub.s32 0, %v773
        %v775 = vrot.slane %v761, %v774
        %v776 = vlaneseq
        %v777 = vshrl.u32 %v776, 7
        %v778 = vsub.s32 1, %v777
        %v779 = vrot.slane %v761, %v778
        %v782 = vmul.f32 %v763, %v775
        %v783 = vmul.f32 %v764, %v779
        %v784 = vmul.f32 %v765, %v775
        %v785 = vmul.f32 %v766, %v779
        %v786 = vmul.f32 %v767, %v775
        %v787 = vmul.f32 %v768, %v779
        %v788 = vmul.f32 %v769, %v775
        %v789 = vmul.f32 %v770, %v779
        %v790 = vadd.f32 %v614, %v782
        %v791 = vadd.f32 %v616, %v783
        %v792 = vadd.f32 %v620, %v784
        %v793 = vadd.f32 %v622, %v785
        %v794 = vadd.f32 %v626, %v786
        %v795 = vadd.f32 %v628, %v787
        %v796 = vadd.f32 %v632, %v788
        %v797 = vadd.f32 %v634, %v789
        %v799 = vlaneseq
        %v800 = vshrl.u32 %v799, 7
        %v801 = vsub.s32 0, %v800
        %v802 = vrot.slane %v762, %v801
        %v803 = vlaneseq
        %v804 = vshrl.u32 %v803, 7
        %v805 = vsub.s32 1, %v804
        %v806 = vrot.slane %v762, %v805
        %v809 = vmul.f32 %v790, %v802
        %v810 = vmul.f32 %v791, %v806
        %v811 = vmul.f32 %v792, %v802
        %v812 = vmul.f32 %v793, %v806
        %v813 = vmul.f32 %v794, %v802
        %v814 = vmul.f32 %v795, %v806
        %v815 = vmul.f32 %v796, %v802
        %v816 = vmul.f32 %v797, %v806
        %817 = vst [vmem:[%s455] sm:$0xff] %v809
        %818 = vst [vmem:[%s455 + $0x8] sm:$0xff] %v810
        %819 = vst [vmem:[%s455 + $0x10] sm:$0xff] %v811
        %820 = vst [vmem:[%s455 + $0x18] sm:$0xff] %v812
        %821 = vst [vmem:[%s455 + $0x20] sm:$0xff] %v813
        %822 = vst [vmem:[%s455 + $0x28] sm:$0xff] %v814
        %823 = vst [vmem:[%s455 + $0x30] sm:$0xff] %v815
        %824 = vst [vmem:[%s455 + $0x38] sm:$0xff] %v816
        %s825 = sand.u32 %s251, 1
        %s826 = scalar_lea.sflag [#allocation4], %s825
        %s827 = sand.u32 %s251, 1
        %s828 = smul.addr %s827, 64
        %s829 = scalar_lea.vmem [#allocation8], %s828
        // Predicated region
        $region69: #{tpu_custom_call.1} parent=55 // pred_check
          %p830 = pneg %p261
        $region70: #{tpu_custom_call.1} parent=55 // pred_check_branch
          %832 = sbr.rel (%p830) target = $region72
        $region71: #{tpu_custom_call.1} parent=55 // pred_region
          %s833 = smul.u32 2, %s29
          %s835 = ssub.s32 1024, 1024
          %836 = vsyncadd %s826, %s835
          %s837 = smul.addr %s833, 128
          %s838 = scalar_lea.hbm %s9, %s837
          %s839 = sshll.u32 %s829, 4
          %s840 = int_to_ptr.vmem [resolvable:$true] %s839
          %845 = dma.vmem_to_hbm [thread:$0]  %s840, 1024, %s838, %s826, 256, 512, 16
        $region72: #{tpu_custom_call.1} parent=55 // pred_fallthru
          _
      $region56: #{tpu_custom_call.1} parent=5 // pred_fallthru
        _
      %p846 = scmp.le.s32.totalorder 2, %s24
      // Predicated region
      $region73: #{tpu_custom_call.1} parent=5 // pred_check
        %p847 = pneg %p846
      $region74: #{tpu_custom_call.1} parent=5 // pred_check_branch
        %849 = sbr.rel (%p847) target = $region76
      $region75: #{tpu_custom_call.1} parent=5 // pred_region
        %s850 = ssub.s32 %s24, 2
        // Predicated region
        $region77: #{tpu_custom_call.1} parent=75 // pred_check
          %p851 = pneg %p267
        $region78: #{tpu_custom_call.1} parent=75 // pred_check_branch
          %853 = sbr.rel (%p851) target = $region80
        $region79: #{tpu_custom_call.1} parent=75 // pred_region
          %s854 = sand.u32 %s252, 1
          %s855 = scalar_lea.sflag [#allocation4], %s854
          %s856 = sand.u32 %s252, 1
          %s857 = smul.addr %s856, 64
          %s858 = scalar_lea.vmem [#allocation8], %s857
          %859 = dma.done %s855, 1024
        $region80: #{tpu_custom_call.1} parent=75 // pred_fallthru
          _
      $region76: #{tpu_custom_call.1} parent=5 // pred_fallthru
        _
    $region6: #{tpu_custom_call.1} parent=1 // loop_footer
      %s28 = sadd.s32 1, %s24
    $region7: #{tpu_custom_call.1} parent=1 // loop_footer_branch
      %23 = sbr.rel target = $region3
    $region8: #{tpu_custom_call.1} parent=1 // loop_exit
      _
    %860 = vsyncpa [#allocation3], 1
    %s861 = scalar_lea.sflag [#allocation3], 1
    %862 = vsyncpa %s861, 1
    %863 = vsyncpa [#allocation6], 1
    %s864 = scalar_lea.sflag [#allocation6], 1
    %865 = vsyncpa %s864, 1
    %866 = vsyncpa [#allocation4], 1
    %s867 = scalar_lea.sflag [#allocation4], 1
    %868 = vsyncpa %s867, 1

</llo_original>
